<compile_context>
chip_gen: v5e
topology: v5e:2x2
jax: 0.10.0
libtpu: 0.0.40
codegen_flags: <defaults>
</compile_context>

<pallas_src>
import functools

import jax
import jax.numpy as jnp
from jax.experimental import pallas as pl
from jax.experimental.pallas import tpu as pltpu

_LANES = 128
_SUBLANES = 8


def _weighted_add_kernel(w_ref, *refs, n_inputs):
    # w_ref : SMEM (n_inputs,) -- normalized weights: relu(w) / (sum(relu(w)) + eps)
    # refs  : n_inputs VMEM input tiles (TR, 128) followed by the output tile.
    x_refs = refs[:n_inputs]
    o_ref = refs[n_inputs]
    acc = w_ref[0] * x_refs[0][...]          # init from first term (no zeros+add)
    for i in range(1, n_inputs):             # static unroll over the input count
        acc = acc + w_ref[i] * x_refs[i][...]
    o_ref[...] = acc


def _round_up(x, m):
    return ((x + m - 1) // m) * m


@functools.partial(jax.jit, static_argnames=("epsilon",))
def _bifpn_weighted_add_impl(inputs, w, *, epsilon):
    n = len(inputs)
    orig_shape = inputs[0].shape
    total = 1
    for d in orig_shape:
        total *= d

    # Hoisted weight math:  out = sum_i (relu(w)_i / (sum relu(w) + eps)) * x_i
    w_relu = jnp.maximum(w.astype(jnp.float32), 0.0)
    w_norm = w_relu / (jnp.sum(w_relu) + jnp.float32(epsilon))

    # Lane-dense (R, 128) view of each input. Only pad when the element count
    # is not already a multiple of 8*128 (padding costs an extra copy, so it
    # is the exception path, not the common one).
    padded_total = _round_up(total, _SUBLANES * _LANES)
    pad = padded_total - total
    R = padded_total // _LANES
    flats = []
    for xi in inputs:
        f = xi.reshape(-1).astype(jnp.float32)
        if pad:
            f = jnp.pad(f, (0, pad))
        flats.append(f.reshape(R, _LANES))

    # Row tile: large enough to amortize per-step pipeline overhead, capped so
    # (n+1) double-buffered blocks fit the smallest scoped VMEM budget, and
    # chosen so the grid has >= 2 steps whenever possible (v7x megacore).
    tr = min(1024, _round_up(pl.cdiv(R, 2), _SUBLANES))
    grid = (pl.cdiv(R, tr),)

    kernel = functools.partial(_weighted_add_kernel, n_inputs=n)

    def _block_map(r, w_ref):  # scalar-prefetch ref is a trailing positional arg
        return (r, 0)

    out = pl.pallas_call(
        kernel,
        out_shape=jax.ShapeDtypeStruct((R, _LANES), jnp.float32),
        grid_spec=pltpu.PrefetchScalarGridSpec(
            num_scalar_prefetch=1,                       # w_norm -> SMEM
            grid=grid,
            in_specs=[pl.BlockSpec((tr, _LANES), _block_map) for _ in range(n)],
            out_specs=pl.BlockSpec((tr, _LANES), _block_map),
        ),
        compiler_params=pltpu.CompilerParams(
            dimension_semantics=("parallel",)),
    )(w_norm, *flats)

    out = out.reshape(-1)
    if pad:
        out = out[:total]
    return out.reshape(orig_shape)


def bifpn_weighted_add(inputs, w, epsilon=1e-4):
    """inputs: list of same-shape f32 arrays (NCHW). w: (len(inputs),) f32."""
    return _bifpn_weighted_add_impl(list(inputs), w, epsilon=float(epsilon))


def _reference(inputs, w, epsilon=1e-4):
    w_relu = jnp.maximum(w, 0.0)
    stacked = jnp.stack([w_relu[i] * inputs[i] for i in range(len(inputs))], axis=0)
    return stacked.sum(axis=0) / (w_relu.sum() + epsilon)


if __name__ == "__main__":
    inputs_count = 3
    init = 0.5
    epsilon = 1e-4

    # Deterministic parameter init (matches nn.Parameter filled with 0.5).
    w = jnp.full((inputs_count,), init, dtype=jnp.float32)

    # Deterministic small NCHW inputs.
    key = jax.random.PRNGKey(0)
    keys = jax.random.split(key, inputs_count)
    shape = (2, 4, 16, 16)  # B, C, H, W
    inputs = [jax.random.normal(k, shape, dtype=jnp.float32) for k in keys]

    out = bifpn_weighted_add(inputs, w, epsilon=epsilon)
    out = jax.block_until_ready(out)

    ref = _reference(inputs, w, epsilon=epsilon)
    assert out.shape == shape and out.dtype == jnp.float32
    assert jnp.allclose(out, ref, atol=1e-5, rtol=1e-5)

    print("KERNEL_OK")
</pallas_src>

<mosaic_0001>
module attributes {stable_mosaic.version = 11 : i64} {
  func.func @_weighted_add_kernel(%arg0: i32, %arg1: memref<3xf32, #tpu.memory_space<smem>>, %arg2: memref<8x128xf32, #tpu.memory_space<vmem>>, %arg3: memref<8x128xf32, #tpu.memory_space<vmem>>, %arg4: memref<8x128xf32, #tpu.memory_space<vmem>>, %arg5: memref<8x128xf32, #tpu.memory_space<vmem>>) attributes {dimension_semantics = [#tpu.dimension_semantics<parallel>], iteration_bounds = array<i64: 2>, scalar_prefetch = 1 : i64, scratch_operands = 0 : i64, tpu.core_type = #tpu.core_type<tc>, window_params = [{transform_indices = @transform_0, window_bounds = array<i64: 8, 128>}, {transform_indices = @transform_1, window_bounds = array<i64: 8, 128>}, {transform_indices = @transform_2, window_bounds = array<i64: 8, 128>}, {transform_indices = @transform_3, window_bounds = array<i64: 8, 128>}]} {
    %c0 = arith.constant 0 : index
    %0 = memref.load %arg1[%c0] : memref<3xf32, #tpu.memory_space<smem>>
    %c0_0 = arith.constant 0 : index
    %c0_1 = arith.constant 0 : index
    %1 = vector.load %arg2[%c0_0, %c0_1] : memref<8x128xf32, #tpu.memory_space<vmem>>, vector<8x128xf32>
    %2 = vector.broadcast %0 : f32 to vector<8x128xf32>
    %3 = arith.mulf %2, %1 : vector<8x128xf32>
    %c1 = arith.constant 1 : index
    %4 = memref.load %arg1[%c1] : memref<3xf32, #tpu.memory_space<smem>>
    %c0_2 = arith.constant 0 : index
    %c0_3 = arith.constant 0 : index
    %5 = vector.load %arg3[%c0_2, %c0_3] : memref<8x128xf32, #tpu.memory_space<vmem>>, vector<8x128xf32>
    %6 = vector.broadcast %4 : f32 to vector<8x128xf32>
    %7 = arith.mulf %6, %5 : vector<8x128xf32>
    %8 = arith.addf %3, %7 : vector<8x128xf32>
    %c2 = arith.constant 2 : index
    %9 = memref.load %arg1[%c2] : memref<3xf32, #tpu.memory_space<smem>>
    %c0_4 = arith.constant 0 : index
    %c0_5 = arith.constant 0 : index
    %10 = vector.load %arg4[%c0_4, %c0_5] : memref<8x128xf32, #tpu.memory_space<vmem>>, vector<8x128xf32>
    %11 = vector.broadcast %9 : f32 to vector<8x128xf32>
    %12 = arith.mulf %11, %10 : vector<8x128xf32>
    %13 = arith.addf %8, %12 : vector<8x128xf32>
    %c0_6 = arith.constant 0 : index
    %c0_7 = arith.constant 0 : index
    %14 = vector.load %arg5[%c0_6, %c0_7] : memref<8x128xf32, #tpu.memory_space<vmem>>, vector<8x128xf32>
    tpu.vector_store %arg5[%c0_6, %c0_7], %13 {strides = array<i32>} : memref<8x128xf32, #tpu.memory_space<vmem>>, vector<8x128xf32>,
    return
  }
  func.func @transform_0(%arg0: i32, %arg1: memref<3xf32, #tpu.memory_space<smem>>) -> (i32, i32) {
    %c0_i32 = arith.constant 0 : i32
    %c0_i32_0 = arith.constant 0 : i32
    return %arg0, %c0_i32 : i32, i32
  }
  func.func @transform_1(%arg0: i32, %arg1: memref<3xf32, #tpu.memory_space<smem>>) -> (i32, i32) {
    %c0_i32 = arith.constant 0 : i32
    %c0_i32_0 = arith.constant 0 : i32
    return %arg0, %c0_i32 : i32, i32
  }
  func.func @transform_2(%arg0: i32, %arg1: memref<3xf32, #tpu.memory_space<smem>>) -> (i32, i32) {
    %c0_i32 = arith.constant 0 : i32
    %c0_i32_0 = arith.constant 0 : i32
    return %arg0, %c0_i32 : i32, i32
  }
  func.func @transform_3(%arg0: i32, %arg1: memref<3xf32, #tpu.memory_space<smem>>) -> (i32, i32) {
    %c0_i32 = arith.constant 0 : i32
    %c0_i32_0 = arith.constant 0 : i32
    return %arg0, %c0_i32 : i32, i32
  }
}

</mosaic_0001>

<llo_original>
// kernel: _bifpn_weighted_add_impl.1
$region0: #{_bifpn_weighted_add_impl.1}
  #allocation0 [shape = 'u32[]', space=smem, size = 0x4, offset = 0x4, fixed_abs, tag = 'smem constant byte address 0x4 - core index']
  #allocation1 [shape = 'u32[72,128]{1,0:T(1,128)}', space=vmem, size = 0x9000, scoped, tag = 'internal scratch']
  #allocation2 [shape = 's32[1]{0}', space=sflag, size = 0x4, scoped, tag = 'scoped memory for _bifpn_weighted_add_impl.1']
  #allocation3 [shape = 'u8[512]{0}', space=smem, size = 0x200, scoped, tag = 'prefetched SMEM operand 0']
  %s0 = inlined_call_operand.vmem [shape: f32[3], index: 0, kind: input, shape index: {}]
  %s1 = inlined_call_operand.vmem [shape: f32[16,128], index: 1, kind: input, shape index: {}]
  %s2 = inlined_call_operand.vmem [shape: f32[16,128], index: 2, kind: input, shape index: {}]
  %s3 = inlined_call_operand.vmem [shape: f32[16,128], index: 3, kind: input, shape index: {}]
  %s4 = inlined_call_operand.vmem [shape: f32[16,128], index: 4, kind: output, shape index: {}]
  %s5 = sld [smem:[#allocation0]]
  $region45: #{_bifpn_weighted_add_impl.1} parent=0
    _
  %s7 = ssub.s32 1, %s5
  %s8 = scalar_select 0, %s7, %s5
  %s10 = sshll.u32 %s0, 4
  %s11 = int_to_ptr.vmem [resolvable:$true] %s10
  %13 = dma.vmem_to_smem %s11, 16, [#allocation3], [#allocation2]
  %15 = dma.done [#allocation2], 16
  %16 = sfence
  loop: start=0, step=1, limit=4
  $region2: #{_bifpn_weighted_add_impl.1} parent=0 // loop_pre_header
    _
  $region3: #{_bifpn_weighted_add_impl.1} parent=0 // loop_header
    %s18 = sphi 0, %s22
    %p19 = scmp.ge.s32.totalorder %s18, 4
    %s28 = sphi 0, %s30
    %s31 = sphi 0, %s28
    %s32 = sphi 0, %s31
    %s48 = sphi 0, %s32
    %s54 = sphi 0, %s56
    %s57 = sphi 0, %s54
    %s58 = sphi 0, %s57
    %s74 = sphi 0, %s58
    %s80 = sphi 0, %s82
    %s83 = sphi 0, %s80
    %s84 = sphi 0, %s83
    %s100 = sphi 0, %s84
    %s106 = sphi 0, %s108
    %s109 = sphi 0, %s106
    %s110 = sphi 0, %s109
    %s126 = sphi 0, %s110
  $region4: #{_bifpn_weighted_add_impl.1} parent=0 // loop_header_branch
    %21 = sbr.rel (%p19) target = $region8
  $region5: #{_bifpn_weighted_add_impl.1} parent=0 // loop_body
    %s23 = ssub.s32 %s18, 1
    %s24 = ssub.s32 %s18, 2
    %s25 = sadd.s32 %s18, 1
    %s26 = ssub.s32 %s18, %s25
    %p27 = scmp.eq.s32.totalorder %s26, 0
    %s29 = sadd.s32 %s28, 1
    %s30 = scalar_select %p27, %s28, %s29
    %p33 = pneg %p27
    %p34 = scmp.eq.s32.totalorder %s18, 1
    %p35 = por %p33, %p34
    %p36 = scmp.ne.s32.totalorder %s28, %s31
    %p37 = scmp.eq.s32.totalorder %s18, 0
    %p38 = por %p36, %p37
    %p39 = scmp.ne.s32.totalorder %s28, %s31
    %p40 = scmp.eq.s32.totalorder %s23, 1
    %p41 = por %p39, %p40
    %p42 = scmp.ne.s32.totalorder %s31, %s32
    %p43 = scmp.eq.s32.totalorder %s23, 0
    %p44 = por %p42, %p43
    %p45 = scmp.ne.s32.totalorder %s31, %s32
    %p46 = scmp.eq.s32.totalorder %s24, 1
    %p47 = por %p45, %p46
    %p49 = scmp.ne.s32.totalorder %s32, %s48
    %p50 = scmp.eq.s32.totalorder %s24, 0
    %p51 = por %p49, %p50
    %s52 = ssub.s32 %s18, %s25
    %p53 = scmp.eq.s32.totalorder %s52, 0
    %s55 = sadd.s32 %s54, 1
    %s56 = scalar_select %p53, %s54, %s55
    %p59 = pneg %p53
    %p60 = scmp.eq.s32.totalorder %s18, 1
    %p61 = por %p59, %p60
    %p62 = scmp.ne.s32.totalorder %s54, %s57
    %p63 = scmp.eq.s32.totalorder %s18, 0
    %p64 = por %p62, %p63
    %p65 = scmp.ne.s32.totalorder %s54, %s57
    %p66 = scmp.eq.s32.totalorder %s23, 1
    %p67 = por %p65, %p66
    %p68 = scmp.ne.s32.totalorder %s57, %s58
    %p69 = scmp.eq.s32.totalorder %s23, 0
    %p70 = por %p68, %p69
    %p71 = scmp.ne.s32.totalorder %s57, %s58
    %p72 = scmp.eq.s32.totalorder %s24, 1
    %p73 = por %p71, %p72
    %p75 = scmp.ne.s32.totalorder %s58, %s74
    %p76 = scmp.eq.s32.totalorder %s24, 0
    %p77 = por %p75, %p76
    %s78 = ssub.s32 %s18, %s25
    %p79 = scmp.eq.s32.totalorder %s78, 0
    %s81 = sadd.s32 %s80, 1
    %s82 = scalar_select %p79, %s80, %s81
    %p85 = pneg %p79
    %p86 = scmp.eq.s32.totalorder %s18, 1
    %p87 = por %p85, %p86
    %p88 = scmp.ne.s32.totalorder %s80, %s83
    %p89 = scmp.eq.s32.totalorder %s18, 0
    %p90 = por %p88, %p89
    %p91 = scmp.ne.s32.totalorder %s80, %s83
    %p92 = scmp.eq.s32.totalorder %s23, 1
    %p93 = por %p91, %p92
    %p94 = scmp.ne.s32.totalorder %s83, %s84
    %p95 = scmp.eq.s32.totalorder %s23, 0
    %p96 = por %p94, %p95
    %p97 = scmp.ne.s32.totalorder %s83, %s84
    %p98 = scmp.eq.s32.totalorder %s24, 1
    %p99 = por %p97, %p98
    %p101 = scmp.ne.s32.totalorder %s84, %s100
    %p102 = scmp.eq.s32.totalorder %s24, 0
    %p103 = por %p101, %p102
    %s104 = ssub.s32 %s18, %s25
    %p105 = scmp.eq.s32.totalorder %s104, 0
    %s107 = sadd.s32 %s106, 1
    %s108 = scalar_select %p105, %s106, %s107
    %p111 = pneg %p105
    %p112 = scmp.eq.s32.totalorder %s18, 1
    %p113 = por %p111, %p112
    %p114 = scmp.ne.s32.totalorder %s106, %s109
    %p115 = scmp.eq.s32.totalorder %s18, 0
    %p116 = por %p114, %p115
    %p117 = scmp.ne.s32.totalorder %s106, %s109
    %p118 = scmp.eq.s32.totalorder %s23, 1
    %p119 = por %p117, %p118
    %p120 = scmp.ne.s32.totalorder %s109, %s110
    %p121 = scmp.eq.s32.totalorder %s23, 0
    %p122 = por %p120, %p121
    %p123 = scmp.ne.s32.totalorder %s109, %s110
    %p124 = scmp.eq.s32.totalorder %s24, 1
    %p125 = por %p123, %p124
    %p127 = scmp.ne.s32.totalorder %s110, %s126
    %p128 = scmp.eq.s32.totalorder %s24, 0
    %p129 = por %p127, %p128
    %p130 = scmp.le.s32.totalorder 1, %s18
    %p131 = scmp.lt.s32.totalorder %s18, 3
    %p132 = pnand %p130, %p131
    %p133 = pneg %p132
    // Predicated region
    $region9: #{_bifpn_weighted_add_impl.1} parent=5 // pred_check
      _
    $region10: #{_bifpn_weighted_add_impl.1} parent=5 // pred_check_branch
      %135 = sbr.rel (%p132) target = $region12
    $region11: #{_bifpn_weighted_add_impl.1} parent=5 // pred_region
      %s136 = ssub.s32 %s18, 1
    $region12: #{_bifpn_weighted_add_impl.1} parent=5 // pred_fallthru
      _
    %p137 = scmp.lt.s32.totalorder %s18, 2
    // Predicated region
    $region13: #{_bifpn_weighted_add_impl.1} parent=5 // pred_check
      %p138 = pneg %p137
    $region14: #{_bifpn_weighted_add_impl.1} parent=5 // pred_check_branch
      %140 = sbr.rel (%p138) target = $region16
    $region15: #{_bifpn_weighted_add_impl.1} parent=5 // pred_region
      // Predicated region
      $region17: #{_bifpn_weighted_add_impl.1} parent=15 // pred_check
        %p141 = pneg %p38
      $region18: #{_bifpn_weighted_add_impl.1} parent=15 // pred_check_branch
        %143 = sbr.rel (%p141) target = $region20
      $region19: #{_bifpn_weighted_add_impl.1} parent=15 // pred_region
        %p144 = scmp.lt.s32.totalorder %s18, 1
        %s145 = scalar_select %p144, %s18, 1
        %s146 = smul.addr %s145, 8
        %s147 = scalar_lea.vmem %s1, %s146
      $region20: #{_bifpn_weighted_add_impl.1} parent=15 // pred_fallthru
        _
      // Predicated region
      $region21: #{_bifpn_weighted_add_impl.1} parent=15 // pred_check
        %p148 = pneg %p64
      $region22: #{_bifpn_weighted_add_impl.1} parent=15 // pred_check_branch
        %150 = sbr.rel (%p148) target = $region24
      $region23: #{_bifpn_weighted_add_impl.1} parent=15 // pred_region
        %p151 = scmp.lt.s32.totalorder %s18, 1
        %s152 = scalar_select %p151, %s18, 1
        %s153 = smul.addr %s152, 8
        %s154 = scalar_lea.vmem %s2, %s153
      $region24: #{_bifpn_weighted_add_impl.1} parent=15 // pred_fallthru
        _
      // Predicated region
      $region25: #{_bifpn_weighted_add_impl.1} parent=15 // pred_check
        %p155 = pneg %p90
      $region26: #{_bifpn_weighted_add_impl.1} parent=15 // pred_check_branch
        %157 = sbr.rel (%p155) target = $region28
      $region27: #{_bifpn_weighted_add_impl.1} parent=15 // pred_region
        %p158 = scmp.lt.s32.totalorder %s18, 1
        %s159 = scalar_select %p158, %s18, 1
        %s160 = smul.addr %s159, 8
        %s161 = scalar_lea.vmem %s3, %s160
      $region28: #{_bifpn_weighted_add_impl.1} parent=15 // pred_fallthru
        _
    $region16: #{_bifpn_weighted_add_impl.1} parent=5 // pred_fallthru
      _
    %p162 = scmp.le.s32.totalorder 1, %s18
    %p163 = scmp.lt.s32.totalorder %s18, 3
    %p164 = pnand %p162, %p163
    %p165 = pneg %p164
    // Predicated region
    $region29: #{_bifpn_weighted_add_impl.1} parent=5 // pred_check
      _
    $region30: #{_bifpn_weighted_add_impl.1} parent=5 // pred_check_branch
      %167 = sbr.rel (%p164) target = $region32
    $region31: #{_bifpn_weighted_add_impl.1} parent=5 // pred_region
      %s168 = ssub.s32 %s18, 1
      %p169 = scmp.lt.s32.totalorder %s23, 1
      %s170 = scalar_select %p169, %s23, 1
      %s171 = smul.addr %s170, 8
      %s172 = scalar_lea.vmem %s1, %s171
      %p173 = pneg %p44
      %p174 = pneg %p41
      %p175 = scmp.lt.s32.totalorder %s23, 1
      %s176 = scalar_select %p175, %s23, 1
      %s177 = smul.addr %s176, 8
      %s178 = scalar_lea.vmem %s2, %s177
      %p179 = pneg %p70
      %p180 = pneg %p67
      %p181 = scmp.lt.s32.totalorder %s23, 1
      %s182 = scalar_select %p181, %s23, 1
      %s183 = smul.addr %s182, 8
      %s184 = scalar_lea.vmem %s3, %s183
      %p185 = pneg %p96
      %p186 = pneg %p93
      %p187 = pneg %p122
      %p188 = pneg %p119
      %p189 = scmp.lt.s32.totalorder %s23, 1
      %s190 = scalar_select %p189, %s23, 1
      %s191 = smul.addr %s190, 8
      %s192 = scalar_lea.vmem %s4, %s191
      %p193 = scmp.lt.s32.totalorder %s23, 1
      %s194 = scalar_select %p193, %s23, 1
      %s195 = smul.addr %s194, 8
      %s196 = scalar_lea.vmem %s1, %s195
      %p197 = scmp.lt.s32.totalorder %s23, 1
      %s198 = scalar_select %p197, %s23, 1
      %s199 = smul.addr %s198, 8
      %s200 = scalar_lea.vmem %s2, %s199
      %p201 = scmp.lt.s32.totalorder %s23, 1
      %s202 = scalar_select %p201, %s23, 1
      %s203 = smul.addr %s202, 8
      %s204 = scalar_lea.vmem %s3, %s203
      %p205 = scmp.lt.s32.totalorder %s23, 1
      %s206 = scalar_select %p205, %s23, 1
      %s207 = smul.addr %s206, 8
      %s208 = scalar_lea.vmem %s4, %s207
      %s209 = sld [smem:[#allocation3]]
      %v210 = vld [vmem:[%s196] sm:$0xff]
      %v211 = vstv %s209
      %v212 = vmul.f32 %v211, %v210
      %s213 = sld [smem:[#allocation3 + $0x1]]
      %v214 = vld [vmem:[%s200] sm:$0xff]
      %v215 = vstv %s213
      %v216 = vmul.f32 %v215, %v214
      %v217 = vadd.f32 %v212, %v216
      %s218 = sld [smem:[#allocation3 + $0x2]]
      %v219 = vld [vmem:[%s204] sm:$0xff]
      %v220 = vstv %s218
      %v221 = vmul.f32 %v220, %v219
      %v222 = vadd.f32 %v217, %v221
      %223 = vst [vmem:[%s208] sm:$0xff] %v222
      %p224 = scmp.lt.s32.totalorder %s23, 1
      %s225 = scalar_select %p224, %s23, 1
      %s226 = smul.addr %s225, 8
      %s227 = scalar_lea.vmem %s4, %s226
      // Predicated region
      $region33: #{_bifpn_weighted_add_impl.1} parent=31 // pred_check
        %p228 = pneg %p119
      $region34: #{_bifpn_weighted_add_impl.1} parent=31 // pred_check_branch
        %230 = sbr.rel (%p228) target = $region36
      $region35: #{_bifpn_weighted_add_impl.1} parent=31 // pred_region
        _
      $region36: #{_bifpn_weighted_add_impl.1} parent=31 // pred_fallthru
        _
    $region32: #{_bifpn_weighted_add_impl.1} parent=5 // pred_fallthru
      _
    %p231 = scmp.le.s32.totalorder 2, %s18
    // Predicated region
    $region37: #{_bifpn_weighted_add_impl.1} parent=5 // pred_check
      %p232 = pneg %p231
    $region38: #{_bifpn_weighted_add_impl.1} parent=5 // pred_check_branch
      %234 = sbr.rel (%p232) target = $region40
    $region39: #{_bifpn_weighted_add_impl.1} parent=5 // pred_region
      %s235 = ssub.s32 %s18, 2
      // Predicated region
      $region41: #{_bifpn_weighted_add_impl.1} parent=39 // pred_check
        %p236 = pneg %p125
      $region42: #{_bifpn_weighted_add_impl.1} parent=39 // pred_check_branch
        %238 = sbr.rel (%p236) target = $region44
      $region43: #{_bifpn_weighted_add_impl.1} parent=39 // pred_region
        %p239 = scmp.lt.s32.totalorder %s24, 1
        %s240 = scalar_select %p239, %s24, 1
        %s241 = smul.addr %s240, 8
        %s242 = scalar_lea.vmem %s4, %s241
      $region44: #{_bifpn_weighted_add_impl.1} parent=39 // pred_fallthru
        _
    $region40: #{_bifpn_weighted_add_impl.1} parent=5 // pred_fallthru
      _
  $region6: #{_bifpn_weighted_add_impl.1} parent=0 // loop_footer
    %s22 = sadd.s32 1, %s18
  $region7: #{_bifpn_weighted_add_impl.1} parent=0 // loop_footer_branch
    %17 = sbr.rel target = $region3
  $region8: #{_bifpn_weighted_add_impl.1} parent=0 // loop_exit
    _

</llo_original>
